<compile_context>
chip_gen: v6e
topology: v6e:2x2x1
jax: 0.10.0
libtpu: 0.0.40
codegen_flags: <defaults>
</compile_context>

<pallas_src>
import math

import jax
import jax.numpy as jnp
import numpy as np
from jax.experimental import pallas as pl
from jax.experimental.pallas import tpu as pltpu


def attn_kernel(hid_ref, enc_ref, wht_ref, wet_ref, b_ref, v_ref, out_ref):
    # Per grid step (one batch block of BB batches):
    #   hid_ref: (BB, H_dec)      bf16
    #   enc_ref: (T, BB, H_enc)   f32   (original (T, B, H_enc) layout, sliced over B)
    #   wht_ref: (H_dec, Hd)      bf16
    #   wet_ref: (H_enc, Hd)      bf16
    #   b_ref  : (1, Hd)          f32
    #   v_ref  : (1, Hd)          f32
    #   out_ref: (BB, T)          f32
    T, BB, H_enc = enc_ref.shape
    Hd = v_ref.shape[-1]

    # Decoder-hidden contribution + bias, shared across all T positions (f32 acc).
    pre_h = jnp.dot(hid_ref[...], wht_ref[...],
                    preferred_element_type=jnp.float32) + b_ref[...]          # (BB, Hd)

    # Encoder contribution as ONE MXU contraction with M = T*BB.
    # f32 -> bf16 cast happens here (in-kernel), so HBM only streams 4 B/elem once.
    enc = enc_ref[...].astype(jnp.bfloat16).reshape(T * BB, H_enc)            # (T*BB, H_enc)
    e2d = jnp.dot(enc, wet_ref[...], preferred_element_type=jnp.float32)      # (T*BB, Hd)

    energy = jnp.tanh(e2d.reshape(T, BB, Hd) + pre_h[None, :, :])             # (T, BB, Hd) f32

    # v . energy : VPU multiply + XLU lane reduce (no 1-wide matmul, no concat).
    scores_tb = jnp.sum(energy * v_ref[...][None, :, :], axis=-1)             # (T, BB) f32

    # Single small XLU transpose to the (BB, T) output layout, then a stable softmax
    # over T (lane axis); the divide goes to the EUP via approx reciprocal.
    scores = scores_tb.T                                                       # (BB, T)
    m = jnp.max(scores, axis=-1, keepdims=True)
    e = jnp.exp(scores - m)
    denom = jnp.sum(e, axis=-1, keepdims=True)
    out_ref[...] = (e * pl.reciprocal(denom, approx=True)).astype(out_ref.dtype)


def _vmem_capacity_bytes():
    """Physical VMEM per TensorCore; conservative (v7x-sized) default if unknown."""
    try:
        info = pltpu.get_tpu_info()
        cap = getattr(info, "vmem_capacity_bytes", None)
        if cap:
            return int(cap)
    except Exception:
        pass
    return 64 * 1024 * 1024


def _choose_blocking(B, T, H_enc, H_dec, Hd):
    """Pick the batch block BB and a matching vmem_limit_bytes.

    Legality: BB == B, or BB is a multiple of 8 (f32 sublane tile on the second-to-last
    block dim) that divides B.  Budget counts everything that scales with BB:
      * f32 enc block, double buffered          : 2 * T * H_enc * 4
      * in-kernel bf16 copy of the enc block    :     T * H_enc * 2
      * f32 energy intermediate (T, BB, Hd)     :     T * Hd    * 4
      * scores/exp temps + f32 out (x2 buffers) :  ~3 * T       * 4
      * bf16 hidden block (x2 buffers)          :  2 * H_dec    * 2
    Prefers >= 2 grid steps when a legal split fits (keeps both v7x TensorCores busy);
    on 128 MiB-VMEM parts (v5e/v6e) the larger capacity automatically yields bigger BB.
    """
    vmem = _vmem_capacity_bytes()
    usable = int(vmem * 0.75)                       # headroom for Mosaic internals

    per_batch = T * (10 * H_enc + 4 * Hd + 12) + 4 * H_dec
    fixed = 4 * (H_dec * Hd + H_enc * Hd) + 8 * Hd + (1 << 20)   # weights + slack
    cap = max(1, (usable - fixed) // max(per_batch, 1))

    divisors = sorted({bb for bb in range(8, B + 1, 8) if B % bb == 0} | {B})
    within = [bb for bb in divisors if bb <= cap]
    if within:
        multi = [bb for bb in within if B // bb >= 2]
        bb = max(multi) if multi else max(within)
    else:
        # Nothing fits the nominal budget; take the smallest legal block and let the
        # raised VMEM limit absorb it.
        # TODO(synk): for extreme T*H_enc even the smallest legal block may exceed
        # physical VMEM; that case needs a manual-DMA inner pipeline over T.
        bb = min(divisors)

    step_bytes = fixed + bb * per_batch
    vmem_limit = int(min(max(step_bytes * 1.2, 32 * 1024 * 1024), vmem * 0.9))
    return bb, vmem_limit


def attn_forward(hidden, encoder_outputs, W, b, v):
    """hidden: (1, B, H_dec), encoder_outputs: (T, B, H_enc),
       W: (Hd, H_dec + H_enc), b: (Hd,), v: (Hd,)  ->  (B, 1, T)"""
    _, B, H_dec = hidden.shape
    T, _, H_enc = encoder_outputs.shape
    Hd = v.shape[0]

    BB, vmem_limit = _choose_blocking(B, T, H_enc, H_dec, Hd)
    grid = (B // BB,)

    # Small operands are cast to bf16 on the host side; the BIG encoder tensor stays f32
    # in HBM and is cast inside the kernel (halves its HBM traffic vs. a wrapper cast).
    hid2d = hidden[0].astype(jnp.bfloat16)                 # (B, H_dec)
    wht = W[:, :H_dec].T.astype(jnp.bfloat16)              # (H_dec, Hd)
    wet = W[:, H_dec:].T.astype(jnp.bfloat16)              # (H_enc, Hd)
    b_row = b[None, :].astype(jnp.float32)                 # (1, Hd)
    v_row = v[None, :].astype(jnp.float32)                 # (1, Hd)
    enc = encoder_outputs.astype(jnp.float32)              # (T, B, H_enc), original layout

    out2d = pl.pallas_call(
        attn_kernel,
        out_shape=jax.ShapeDtypeStruct((B, T), jnp.float32),
        grid_spec=pltpu.PrefetchScalarGridSpec(
            num_scalar_prefetch=0,
            grid=grid,
            in_specs=[
                pl.BlockSpec((BB, H_dec), lambda i: (i, 0)),
                pl.BlockSpec((T, BB, H_enc), lambda i: (0, i, 0)),
                pl.BlockSpec((H_dec, Hd), lambda i: (0, 0)),
                pl.BlockSpec((H_enc, Hd), lambda i: (0, 0)),
                pl.BlockSpec((1, Hd), lambda i: (0, 0)),
                pl.BlockSpec((1, Hd), lambda i: (0, 0)),
            ],
            out_specs=pl.BlockSpec((BB, T), lambda i: (i, 0)),
        ),
        compiler_params=pltpu.CompilerParams(
            dimension_semantics=("parallel",),        # batch blocks are independent
            vmem_limit_bytes=vmem_limit,
        ),
    )(hid2d, enc, wht, wet, b_row, v_row)

    return out2d[:, None, :]                               # (B, 1, T) -- free reshape


def attn_reference(hidden, encoder_outputs, W, b, v):
    """Pure-JAX f32 reference mirroring the PyTorch forward exactly."""
    T = encoder_outputs.shape[0]
    H_rep = jnp.broadcast_to(hidden[0][:, None, :],
                             (hidden.shape[1], T, hidden.shape[2]))   # (B, T, H_dec)
    enc = jnp.transpose(encoder_outputs, (1, 0, 2))                    # (B, T, H_enc)
    cat = jnp.concatenate([H_rep, enc], axis=-1)                       # (B, T, H_dec+H_enc)
    energy = jnp.tanh(jnp.einsum("bti,oi->bto", cat, W) + b)           # (B, T, Hd)
    scores = jnp.einsum("h,bth->bt", v, energy)                        # (B, T)
    probs = jax.nn.softmax(scores, axis=1)
    return probs[:, None, :]                                           # (B, 1, T)


if __name__ == "__main__":
    hidden_dims = 32
    embed_size = 16
    B, T = 2, 8
    H_dec = hidden_dims                 # decoder hidden feature dim
    H_enc = hidden_dims + embed_size    # encoder output feature dim (so cat == 2*H + E)
    in_dim = 2 * hidden_dims + embed_size

    key = jax.random.PRNGKey(0)
    k1, k2, k3, k4, k5 = jax.random.split(key, 5)

    # Deterministic parameter init matching nn.Linear / module __init__ shapes.
    bound = 1.0 / math.sqrt(in_dim)
    W = jax.random.uniform(k1, (hidden_dims, in_dim), jnp.float32, -bound, bound)
    b = jax.random.uniform(k2, (hidden_dims,), jnp.float32, -bound, bound)
    v = jax.random.normal(k3, (hidden_dims,), jnp.float32) * (1.0 / math.sqrt(hidden_dims))

    # Inputs in the PyTorch axis convention.
    hidden = jax.random.normal(k4, (1, B, H_dec), jnp.float32)            # (layers*dirs, B, H)
    encoder_outputs = jax.random.normal(k5, (T, B, H_enc), jnp.float32)   # (T, B, H)

    out = attn_forward(hidden, encoder_outputs, W, b, v)
    out = jax.block_until_ready(out)

    ref = attn_reference(hidden, encoder_outputs, W, b, v)
    # bf16 matmul operands + approx reciprocal -> relaxed tolerance vs f32 reference.
    np.testing.assert_allclose(np.asarray(out), np.asarray(ref), rtol=2e-2, atol=2e-2)
    assert out.shape == (B, 1, T)

    print("KERNEL_OK")
</pallas_src>

<mosaic_0001>
module attributes {stable_mosaic.version = 11 : i64} {
  func.func @attn_kernel(%arg0: i32, %arg1: memref<2x32xbf16, #tpu.memory_space<vmem>>, %arg2: memref<8x2x48xf32, #tpu.memory_space<vmem>>, %arg3: memref<32x32xbf16, #tpu.memory_space<vmem>>, %arg4: memref<48x32xbf16, #tpu.memory_space<vmem>>, %arg5: memref<1x32xf32, #tpu.memory_space<vmem>>, %arg6: memref<1x32xf32, #tpu.memory_space<vmem>>, %arg7: memref<2x8xf32, #tpu.memory_space<vmem>>) attributes {dimension_semantics = [#tpu.dimension_semantics<parallel>], iteration_bounds = array<i64: 1>, scalar_prefetch = 0 : i64, scratch_operands = 0 : i64, tpu.core_type = #tpu.core_type<tc>, window_params = [{transform_indices = @transform_0, window_bounds = array<i64: 2, 32>}, {transform_indices = @transform_1, window_bounds = array<i64: 8, 2, 48>}, {pipeline_mode = #tpu.pipeline_mode<synchronous>, transform_indices = @transform_2, window_bounds = array<i64: 32, 32>}, {pipeline_mode = #tpu.pipeline_mode<synchronous>, transform_indices = @transform_3, window_bounds = array<i64: 48, 32>}, {pipeline_mode = #tpu.pipeline_mode<synchronous>, transform_indices = @transform_4, window_bounds = array<i64: 1, 32>}, {pipeline_mode = #tpu.pipeline_mode<synchronous>, transform_indices = @transform_5, window_bounds = array<i64: 1, 32>}, {transform_indices = @transform_6, window_bounds = array<i64: 2, 8>}]} {
    %c0 = arith.constant 0 : index
    %c0_0 = arith.constant 0 : index
    %0 = vector.load %arg1[%c0, %c0_0] : memref<2x32xbf16, #tpu.memory_space<vmem>>, vector<2x32xbf16>
    %c0_1 = arith.constant 0 : index
    %c0_2 = arith.constant 0 : index
    %1 = vector.load %arg3[%c0_1, %c0_2] : memref<32x32xbf16, #tpu.memory_space<vmem>>, vector<32x32xbf16>
    %cst = arith.constant dense<0.000000e+00> : vector<2x32xf32>
    %2 = tpu.matmul %0, %1, %cst {dimension_numbers = #tpu.dot_dimension_numbers<[1], [0], [0], [1], [0, 0, 1, 1], [], []>} : vector<2x32xbf16>, vector<32x32xbf16>, vector<2x32xf32> -> vector<2x32xf32>
    %c0_3 = arith.constant 0 : index
    %c0_4 = arith.constant 0 : index
    %3 = vector.load %arg5[%c0_3, %c0_4] : memref<1x32xf32, #tpu.memory_space<vmem>>, vector<1x32xf32>
    %4 = vector.broadcast %3 : vector<1x32xf32> to vector<2x32xf32>
    %5 = arith.addf %2, %4 : vector<2x32xf32>
    %c0_5 = arith.constant 0 : index
    %c0_6 = arith.constant 0 : index
    %c0_7 = arith.constant 0 : index
    %6 = vector.load %arg2[%c0_5, %c0_6, %c0_7] : memref<8x2x48xf32, #tpu.memory_space<vmem>>, vector<8x2x48xf32>
    %7 = arith.truncf %6 : vector<8x2x48xf32> to vector<8x2x48xbf16>
    %8 = vector.shape_cast %7 : vector<8x2x48xbf16> to vector<16x48xbf16>
    %c0_8 = arith.constant 0 : index
    %c0_9 = arith.constant 0 : index
    %9 = vector.load %arg4[%c0_8, %c0_9] : memref<48x32xbf16, #tpu.memory_space<vmem>>, vector<48x32xbf16>
    %cst_10 = arith.constant dense<0.000000e+00> : vector<16x32xf32>
    %10 = tpu.matmul %8, %9, %cst_10 {dimension_numbers = #tpu.dot_dimension_numbers<[1], [0], [0], [1], [0, 0, 1, 1], [], []>} : vector<16x48xbf16>, vector<48x32xbf16>, vector<16x32xf32> -> vector<16x32xf32>
    %11 = vector.shape_cast %10 : vector<16x32xf32> to vector<8x2x32xf32>
    %12 = vector.shape_cast %5 : vector<2x32xf32> to vector<1x2x32xf32>
    %13 = vector.broadcast %12 : vector<1x2x32xf32> to vector<8x2x32xf32>
    %14 = arith.addf %11, %13 : vector<8x2x32xf32>
    %15 = math.tanh %14 : vector<8x2x32xf32>
    %c0_11 = arith.constant 0 : index
    %c0_12 = arith.constant 0 : index
    %16 = vector.load %arg6[%c0_11, %c0_12] : memref<1x32xf32, #tpu.memory_space<vmem>>, vector<1x32xf32>
    %17 = vector.shape_cast %16 : vector<1x32xf32> to vector<1x1x32xf32>
    %18 = vector.broadcast %17 : vector<1x1x32xf32> to vector<8x2x32xf32>
    %19 = arith.mulf %15, %18 : vector<8x2x32xf32>
    %cst_13 = arith.constant dense<0.000000e+00> : vector<8x2xf32>
    %20 = vector.multi_reduction <add>, %19, %cst_13 [2] : vector<8x2x32xf32> to vector<8x2xf32>
    %21 = tpu.transpose %20, [1, 0] : vector<8x2xf32> -> vector<2x8xf32>
    %cst_14 = arith.constant dense<0xFF800000> : vector<2xf32>
    %22 = vector.multi_reduction <maximumf>, %21, %cst_14 [1] : vector<2x8xf32> to vector<2xf32>
    %23 = vector.shape_cast %22 : vector<2xf32> to vector<2x1xf32>
    %24 = vector.broadcast %23 : vector<2x1xf32> to vector<2x8xf32>
    %25 = arith.subf %21, %24 : vector<2x8xf32>
    %26 = math.exp %25 : vector<2x8xf32>
    %cst_15 = arith.constant dense<0.000000e+00> : vector<2xf32>
    %27 = vector.multi_reduction <add>, %26, %cst_15 [1] : vector<2x8xf32> to vector<2xf32>
    %28 = vector.shape_cast %27 : vector<2xf32> to vector<2x1xf32>
    %29 = tpu.reciprocal %28 {approx = true} : vector<2x1xf32> -> vector<2x1xf32>
    %30 = vector.broadcast %29 : vector<2x1xf32> to vector<2x8xf32>
    %31 = arith.mulf %26, %30 : vector<2x8xf32>
    %c0_16 = arith.constant 0 : index
    %c0_17 = arith.constant 0 : index
    %32 = vector.load %arg7[%c0_16, %c0_17] : memref<2x8xf32, #tpu.memory_space<vmem>>, vector<2x8xf32>
    tpu.vector_store %arg7[%c0_16, %c0_17], %31 {strides = array<i32>} : memref<2x8xf32, #tpu.memory_space<vmem>>, vector<2x8xf32>,
    return
  }
  func.func @transform_0(%arg0: i32) -> (i32, i32) {
    %c0_i32 = arith.constant 0 : i32
    %c0_i32_0 = arith.constant 0 : i32
    return %arg0, %c0_i32 : i32, i32
  }
  func.func @transform_1(%arg0: i32) -> (i32, i32, i32) {
    %c0_i32 = arith.constant 0 : i32
    %c0_i32_0 = arith.constant 0 : i32
    %c0_i32_1 = arith.constant 0 : i32
    return %c0_i32, %arg0, %c0_i32_0 : i32, i32, i32
  }
  func.func @transform_2(%arg0: i32) -> (i32, i32) {
    %c0_i32 = arith.constant 0 : i32
    %c0_i32_0 = arith.constant 0 : i32
    %c0_i32_1 = arith.constant 0 : i32
    return %c0_i32, %c0_i32_0 : i32, i32
  }
  func.func @transform_3(%arg0: i32) -> (i32, i32) {
    %c0_i32 = arith.constant 0 : i32
    %c0_i32_0 = arith.constant 0 : i32
    %c0_i32_1 = arith.constant 0 : i32
    return %c0_i32, %c0_i32_0 : i32, i32
  }
  func.func @transform_4(%arg0: i32) -> (i32, i32) {
    %c0_i32 = arith.constant 0 : i32
    %c0_i32_0 = arith.constant 0 : i32
    %c0_i32_1 = arith.constant 0 : i32
    return %c0_i32, %c0_i32_0 : i32, i32
  }
  func.func @transform_5(%arg0: i32) -> (i32, i32) {
    %c0_i32 = arith.constant 0 : i32
    %c0_i32_0 = arith.constant 0 : i32
    %c0_i32_1 = arith.constant 0 : i32
    return %c0_i32, %c0_i32_0 : i32, i32
  }
  func.func @transform_6(%arg0: i32) -> (i32, i32) {
    %c0_i32 = arith.constant 0 : i32
    %c0_i32_0 = arith.constant 0 : i32
    return %arg0, %c0_i32 : i32, i32
  }
}

</mosaic_0001>

<llo_original>
// kernel: tpu_custom_call.1
$region0: #{tpu_custom_call.1}
  #allocation0 [shape = 'u32[]', space=smem, size = 0x4, offset = 0x4, fixed_abs, tag = 'smem constant byte address 0x4 - core index']
  #allocation1 [shape = 'u32[144,128]{1,0:T(1,128)}', space=vmem, size = 0x12000, scoped, tag = 'internal scratch']
  %s0 = inlined_call_operand.vmem [shape: bf16[2,32], index: 0, kind: input, shape index: {}]
  %s1 = inlined_call_operand.vmem [shape: f32[8,2,48], index: 1, kind: input, shape index: {}]
  %s2 = inlined_call_operand.vmem [shape: bf16[32,32], index: 2, kind: input, shape index: {}]
  %s3 = inlined_call_operand.vmem [shape: bf16[48,32], index: 3, kind: input, shape index: {}]
  %s4 = inlined_call_operand.vmem [shape: f32[1,32], index: 4, kind: input, shape index: {}]
  %s5 = inlined_call_operand.vmem [shape: f32[1,32], index: 5, kind: input, shape index: {}]
  %s6 = inlined_call_operand.hbm [shape: f32[2,8], index: 6, kind: output, shape index: {}]
  %s7 = sld [smem:[#allocation0]]
  $region34: #{tpu_custom_call.1} parent=0
    _
  %s9 = ssub.s32 1, %s7
  %s10 = scalar_select 0, %s9, %s7
  $region1: #{tpu_custom_call.1} parent=0
    #allocation2 [shape = 'u8[1024]{0}', space=vmem, size = 0x400, scoped, tag = 'output window, operand 0, single buffered']
    #allocation3 [shape = 's32[1]{0}', space=sflag, size = 0x4, scoped, tag = 'scoped memory for tpu_custom_call.1']
    %11 = vsyncpa [#allocation3], 0
    // Predicated region
    $region2: #{tpu_custom_call.1} parent=1 // pred_check
      _
    $region3: #{tpu_custom_call.1} parent=1 // pred_check_branch
      %13 = sbr.rel (0) target = $region5
    $region4: #{tpu_custom_call.1} parent=1 // pred_region
      _
    $region5: #{tpu_custom_call.1} parent=1 // pred_fallthru
      _
    // Predicated region
    $region6: #{tpu_custom_call.1} parent=1 // pred_check
      _
    $region7: #{tpu_custom_call.1} parent=1 // pred_check_branch
      %15 = sbr.rel (0) target = $region9
    $region8: #{tpu_custom_call.1} parent=1 // pred_region
      _
    $region9: #{tpu_custom_call.1} parent=1 // pred_fallthru
      _
    // Predicated region
    $region10: #{tpu_custom_call.1} parent=1 // pred_check
      _
    $region11: #{tpu_custom_call.1} parent=1 // pred_check_branch
      %17 = sbr.rel (0) target = $region13
    $region12: #{tpu_custom_call.1} parent=1 // pred_region
      _
    $region13: #{tpu_custom_call.1} parent=1 // pred_fallthru
      _
    // Predicated region
    $region14: #{tpu_custom_call.1} parent=1 // pred_check
      _
    $region15: #{tpu_custom_call.1} parent=1 // pred_check_branch
      %19 = sbr.rel (0) target = $region17
    $region16: #{tpu_custom_call.1} parent=1 // pred_region
      _
    $region17: #{tpu_custom_call.1} parent=1 // pred_fallthru
      _
    // Predicated region
    $region18: #{tpu_custom_call.1} parent=1 // pred_check
      _
    $region19: #{tpu_custom_call.1} parent=1 // pred_check_branch
      %21 = sbr.rel (0) target = $region21
    $region20: #{tpu_custom_call.1} parent=1 // pred_region
      _
    $region21: #{tpu_custom_call.1} parent=1 // pred_fallthru
      _
    // Predicated region
    $region22: #{tpu_custom_call.1} parent=1 // pred_check
      _
    $region23: #{tpu_custom_call.1} parent=1 // pred_check_branch
      %23 = sbr.rel (0) target = $region25
    $region24: #{tpu_custom_call.1} parent=1 // pred_region
      _
    $region25: #{tpu_custom_call.1} parent=1 // pred_fallthru
      _
    %v25 = vld [vmem:[%s0] sm:$0x1]
    %v26 = vld [vmem:[%s2] sm:$0xf]
    %v27 = vld [vmem:[%s2 + $0x4] sm:$0xf]
    %v28 = vld [vmem:[%s2 + $0x8] sm:$0xf]
    %v29 = vld [vmem:[%s2 + $0xc] sm:$0xf]
    %v30 = vld [vmem:[%s4] sm:$0x1]
    %v32 = vlaneseq
    %v33 = vshrl.u32 %v32, 7
    %v34 = vsub.s32 0, %v33
    %v35 = vrot.slane %v30, %v34
    %v41 = vunpack.c.l.b16 %v26
    %v42 = vunpack.c.l.b16 %v27
    %v43 = vunpack.c.l.b16 %v28
    %v44 = vunpack.c.l.b16 %v29
    %v45 = vpack.c.b16 %v42, %v41
    %v46 = vpack.c.b16 %v44, %v43
    %vm49 = vcmask 261120
    %v51 = vsel %vm49, %v25, 0
    %53 = vmatprep.subr.bf16.mxu0 0
    %54 = vmatpush1.bf16.msra.mxu0 0
    %55 = vmatprep.subr.bf16.mxu0 0
    %56 = vmatpush1.bf16.msra.mxu0 0
    %57 = vmatprep.subr.bf16.mxu0 0
    %58 = vmatpush1.bf16.msra.mxu0 0
    %59 = vmatprep.subr.bf16.mxu0 0
    %60 = vmatpush1.bf16.msra.mxu0 0
    %61 = vmatprep.subr.bf16.mxu0 0
    %62 = vmatpush1.bf16.msra.mxu0 0
    %63 = vmatprep.subr.bf16.mxu0 0
    %64 = vmatpush1.bf16.msra.mxu0 0
    %65 = vmatprep.subr.bf16.mxu0 0
    %66 = vmatpush1.bf16.msra.mxu0 %v46
    %67 = vmatprep.subr.bf16.mxu0 0
    %68 = vmatpush1.bf16.msra.mxu0 %v45
    %69 = vmatprep.subr.bf16.mxu0 0
    %70 = vmatpush2.bf16.msra.mxu0 0
    %71 = vmatprep.subr.bf16.mxu0 0
    %72 = vmatpush2.bf16.msra.mxu0 0
    %73 = vmatprep.subr.bf16.mxu0 0
    %74 = vmatpush2.bf16.msra.mxu0 0
    %75 = vmatprep.subr.bf16.mxu0 0
    %76 = vmatpush2.bf16.msra.mxu0 0
    %77 = vmatprep.subr.bf16.mxu0 0
    %78 = vmatpush2.bf16.msra.mxu0 0
    %79 = vmatprep.subr.bf16.mxu0 0
    %80 = vmatpush2.bf16.msra.mxu0 0
    %81 = vmatprep.subr.bf16.mxu0 0
    %82 = vmatpush2.bf16.msra.mxu0 0
    %83 = vmatprep.subr.bf16.mxu0 0
    %84 = vmatpush2.bf16.msra.mxu0 0
    %85 = vmatprep.mubr.bf16.mxu0 0
    %86 = vmatmul.mubr.bf16.gmra.mxu0 %v51
    %v87 = vpop.f32.mrf.mxu0
    %v88 = vadd.f32 %v35, %v87
    %v89 = vpop.f32.mrf.mxu0
    %v90 = vpop.f32.mrf.mxu0
    %v91 = vpop.f32.mrf.mxu0
    %92 = vdwg.mxu0
    %v93 = vld [vmem:[%s1] sm:$0x3]
    %v94 = vld [vmem:[%s1 + $0x2] sm:$0x3]
    %v95 = vld [vmem:[%s1 + $0x4] sm:$0x3]
    %v96 = vld [vmem:[%s1 + $0x6] sm:$0x3]
    %v97 = vld [vmem:[%s1 + $0x8] sm:$0x3]
    %v98 = vld [vmem:[%s1 + $0xa] sm:$0x3]
    %v99 = vld [vmem:[%s1 + $0xc] sm:$0x3]
    %v100 = vld [vmem:[%s1 + $0xe] sm:$0x3]
    %v101 = vpack.c.bf16 %v93, %v93
    %v102 = vpack.c.bf16 %v94, %v94
    %v103 = vpack.c.bf16 %v95, %v95
    %v104 = vpack.c.bf16 %v96, %v96
    %v105 = vpack.c.bf16 %v97, %v97
    %v106 = vpack.c.bf16 %v98, %v98
    %v107 = vpack.c.bf16 %v99, %v99
    %v108 = vpack.c.bf16 %v100, %v100
    %v109 = vld [vmem:[%s3] sm:$0xf]
    %v110 = vld [vmem:[%s3 + $0x4] sm:$0xf]
    %v111 = vld [vmem:[%s3 + $0x8] sm:$0xf]
    %v112 = vld [vmem:[%s3 + $0xc] sm:$0xf]
    %v113 = vld [vmem:[%s3 + $0x10] sm:$0xf]
    %v114 = vld [vmem:[%s3 + $0x14] sm:$0xf]
    %v123 = vcombine.low %v101, %v102
    %v124 = vcombine.low %v103, %v104
    %v125 = vcombine.low %v105, %v106
    %v126 = vcombine.low %v107, %v108
    %v128 = vunpack.c.l.s4 1966171168
    %v129 = vunpack.c.0.s8 %v128
    %v130 = vlaneseq
    %v131 = vshrl.u32 %v130, 7
    %v132 = vsub.s32 %v129, %v131
    %v133 = vrot.slane %v123, %v132
    %v135 = vunpack.c.l.s4 1966171168
    %v136 = vunpack.c.0.s8 %v135
    %v137 = vlaneseq
    %v138 = vshrl.u32 %v137, 7
    %v139 = vsub.s32 %v136, %v138
    %v140 = vrot.slane %v124, %v139
    %v142 = vunpack.c.l.s4 1966171168
    %v143 = vunpack.c.0.s8 %v142
    %v144 = vlaneseq
    %v145 = vshrl.u32 %v144, 7
    %v146 = vsub.s32 %v143, %v145
    %v147 = vrot.slane %v125, %v146
    %v149 = vunpack.c.l.s4 1966171168
    %v150 = vunpack.c.0.s8 %v149
    %v151 = vlaneseq
    %v152 = vshrl.u32 %v151, 7
    %v153 = vsub.s32 %v150, %v152
    %v154 = vrot.slane %v126, %v153
    %v155 = vcombine.low %v133, %v140
    %v156 = vcombine.low %v147, %v154
    %v158 = vunpack.c.l.s4 1966171168
    %v159 = vunpack.c.0.s8 %v158
    %v160 = vlaneseq
    %v161 = vshrl.u32 %v160, 7
    %v162 = vsub.s32 %v159, %v161
    %v163 = vrot.slane %v155, %v162
    %v165 = vunpack.c.l.s4 1966171168
    %v166 = vunpack.c.0.s8 %v165
    %v167 = vlaneseq
    %v168 = vshrl.u32 %v167, 7
    %v169 = vsub.s32 %v166, %v168
    %v170 = vrot.slane %v156, %v169
    %v171 = vcombine.low %v163, %v170
    %v178 = vunpack.c.l.b16 %v109
    %v179 = vunpack.c.l.b16 %v110
    %v180 = vunpack.c.l.b16 %v111
    %v181 = vunpack.c.l.b16 %v112
    %v182 = vunpack.c.l.b16 %v113
    %v183 = vunpack.c.l.b16 %v114
    %v184 = vpack.c.b16 %v179, %v178
    %v185 = vpack.c.b16 %v181, %v180
    %v186 = vpack.c.b16 %v183, %v182
    %vm190 = vcmask 392192
    %v192 = vsel %vm190, %v171, 0
    %194 = vmatprep.subr.bf16.mxu0 0
    %195 = vmatpush1.bf16.msra.mxu0 0
    %196 = vmatprep.subr.bf16.mxu0 0
    %197 = vmatpush1.bf16.msra.mxu0 0
    %198 = vmatprep.subr.bf16.mxu0 0
    %199 = vmatpush1.bf16.msra.mxu0 0
    %200 = vmatprep.subr.bf16.mxu0 0
    %201 = vmatpush1.bf16.msra.mxu0 0
    %202 = vmatprep.subr.bf16.mxu0 0
    %203 = vmatpush1.bf16.msra.mxu0 0
    %204 = vmatprep.subr.bf16.mxu0 0
    %205 = vmatpush1.bf16.msra.mxu0 %v186
    %206 = vmatprep.subr.bf16.mxu0 0
    %207 = vmatpush1.bf16.msra.mxu0 %v185
    %208 = vmatprep.subr.bf16.mxu0 0
    %209 = vmatpush1.bf16.msra.mxu0 %v184
    %210 = vmatprep.subr.bf16.mxu0 0
    %211 = vmatpush2.bf16.msra.mxu0 0
    %212 = vmatprep.subr.bf16.mxu0 0
    %213 = vmatpush2.bf16.msra.mxu0 0
    %214 = vmatprep.subr.bf16.mxu0 0
    %215 = vmatpush2.bf16.msra.mxu0 0
    %216 = vmatprep.subr.bf16.mxu0 0
    %217 = vmatpush2.bf16.msra.mxu0 0
    %218 = vmatprep.subr.bf16.mxu0 0
    %219 = vmatpush2.bf16.msra.mxu0 0
    %220 = vmatprep.subr.bf16.mxu0 0
    %221 = vmatpush2.bf16.msra.mxu0 0
    %222 = vmatprep.subr.bf16.mxu0 0
    %223 = vmatpush2.bf16.msra.mxu0 0
    %224 = vmatprep.subr.bf16.mxu0 0
    %225 = vmatpush2.bf16.msra.mxu0 0
    %226 = vmatprep.mubr.bf16.mxu0 0
    %227 = vmatmul.mubr.bf16.gmra.mxu0 %v192
    %v228 = vpop.f32.mrf.mxu0
    %v229 = vadd.f32 0.0, %v228
    %v230 = vpop.f32.mrf.mxu0
    %v231 = vpop.f32.mrf.mxu0
    %v232 = vadd.f32 0.0, %v231
    %v233 = vpop.f32.mrf.mxu0
    %234 = vdwg.mxu0
    %v237 = vcombine.high %v229, %v229
    %v239 = vunpack.c.l.s4 1983009808
    %v240 = vunpack.c.0.s8 %v239
    %v241 = vlaneseq
    %v242 = vshrl.u32 %v241, 7
    %v243 = vsub.s32 %v240, %v242
    %v244 = vrot.slane %v229, %v243
    %v246 = vunpack.c.l.s4 1983009808
    %v247 = vunpack.c.0.s8 %v246
    %v248 = vlaneseq
    %v249 = vshrl.u32 %v248, 7
    %v250 = vsub.s32 %v247, %v249
    %v251 = vrot.slane %v237, %v250
    %v252 = vcombine.high %v244, %v244
    %v253 = vcombine.high %v251, %v251
    %v254 = vcombine.high %v232, %v232
    %v256 = vunpack.c.l.s4 1983009808
    %v257 = vunpack.c.0.s8 %v256
    %v258 = vlaneseq
    %v259 = vshrl.u32 %v258, 7
    %v260 = vsub.s32 %v257, %v259
    %v261 = vrot.slane %v232, %v260
    %v263 = vunpack.c.l.s4 1983009808
    %v264 = vunpack.c.0.s8 %v263
    %v265 = vlaneseq
    %v266 = vshrl.u32 %v265, 7
    %v267 = vsub.s32 %v264, %v266
    %v268 = vrot.slane %v254, %v267
    %v269 = vcombine.high %v261, %v261
    %v270 = vcombine.high %v268, %v268
    %v279 = vadd.f32 %v244, %v88
    %v280 = vadd.f32 %v252, %v88
    %v281 = vadd.f32 %v251, %v88
    %v282 = vadd.f32 %v253, %v88
    %v283 = vadd.f32 %v261, %v88
    %v284 = vadd.f32 %v269, %v88
    %v285 = vadd.f32 %v268, %v88
    %v286 = vadd.f32 %v270, %v88
    %v287 = vtanh.pop %v279
    %v288 = vtanh.pop %v280
    %v289 = vtanh.pop %v281
    %v290 = vtanh.pop %v282
    %v291 = vtanh.pop %v283
    %v292 = vtanh.pop %v284
    %v293 = vtanh.pop %v285
    %v294 = vtanh.pop %v286
    %v295 = vld [vmem:[%s5] sm:$0x1]
    %v297 = vlaneseq
    %v298 = vshrl.u32 %v297, 7
    %v299 = vsub.s32 0, %v298
    %v300 = vrot.slane %v295, %v299
    %v302 = vmul.f32 %v287, %v300
    %v303 = vmul.f32 %v288, %v300
    %v304 = vmul.f32 %v289, %v300
    %v305 = vmul.f32 %v290, %v300
    %v306 = vmul.f32 %v291, %v300
    %v307 = vmul.f32 %v292, %v300
    %v308 = vmul.f32 %v293, %v300
    %v309 = vmul.f32 %v294, %v300
    %vm310 = vcmask 254976
    %v311 = vsel %vm310, %v302, 0.0
    %312 = vadd.xlane.f32.xlu0 %v311
    %v313 = vpop.xlane.xlu0 %312
    %v314 = vsel %vm310, %v303, 0.0
    %315 = vadd.xlane.f32.xlu0 %v314
    %v316 = vpop.xlane.xlu0 %315
    %v317 = vsel %vm310, %v304, 0.0
    %318 = vadd.xlane.f32.xlu0 %v317
    %v319 = vpop.xlane.xlu0 %318
    %v320 = vsel %vm310, %v305, 0.0
    %321 = vadd.xlane.f32.xlu0 %v320
    %v322 = vpop.xlane.xlu0 %321
    %v323 = vsel %vm310, %v306, 0.0
    %324 = vadd.xlane.f32.xlu0 %v323
    %v325 = vpop.xlane.xlu0 %324
    %v326 = vsel %vm310, %v307, 0.0
    %327 = vadd.xlane.f32.xlu0 %v326
    %v328 = vpop.xlane.xlu0 %327
    %v329 = vsel %vm310, %v308, 0.0
    %330 = vadd.xlane.f32.xlu0 %v329
    %v331 = vpop.xlane.xlu0 %330
    %v332 = vsel %vm310, %v309, 0.0
    %333 = vadd.xlane.f32.xlu0 %v332
    %v334 = vpop.xlane.xlu0 %333
    %v343 = vlaneseq
    %v344 = vand.u32 %v343, 127
    %v345 = vlaneseq
    %v346 = vshrl.u32 %v345, 7
    %v347 = vsub.s32 %v344, %v346
    %v348 = vrot.slane %v313, %v347
    %v349 = vlaneseq
    %v350 = vshrl.u32 %v349, 7
    %v351 = vsub.s32 %v344, %v350
    %v352 = vrot.slane %v316, %v351
    %v353 = vlaneseq
    %v354 = vshrl.u32 %v353, 7
    %v355 = vsub.s32 %v344, %v354
    %v356 = vrot.slane %v319, %v355
    %v357 = vlaneseq
    %v358 = vshrl.u32 %v357, 7
    %v359 = vsub.s32 %v344, %v358
    %v360 = vrot.slane %v322, %v359
    %v361 = vlaneseq
    %v362 = vshrl.u32 %v361, 7
    %v363 = vsub.s32 %v344, %v362
    %v364 = vrot.slane %v325, %v363
    %v365 = vlaneseq
    %v366 = vshrl.u32 %v365, 7
    %v367 = vsub.s32 %v344, %v366
    %v368 = vrot.slane %v328, %v367
    %v369 = vlaneseq
    %v370 = vshrl.u32 %v369, 7
    %v371 = vsub.s32 %v344, %v370
    %v372 = vrot.slane %v331, %v371
    %v373 = vlaneseq
    %v374 = vshrl.u32 %v373, 7
    %v375 = vsub.s32 %v344, %v374
    %v376 = vrot.slane %v334, %v375
    %vm377 = vcmask 1041409
    %v378 = vsel %vm377, %v352, %v348
    %vm379 = vcmask 1042434
    %v380 = vsel %vm379, %v356, %v378
    %vm381 = vcmask 1043459
    %v382 = vsel %vm381, %v360, %v380
    %vm383 = vcmask 1044484
    %v384 = vsel %vm383, %v364, %v382
    %vm385 = vcmask 1045509
    %v386 = vsel %vm385, %v368, %v384
    %vm387 = vcmask 1046534
    %v388 = vsel %vm387, %v372, %v386
    %vm389 = vcmask 1047559
    %v390 = vsel %vm389, %v376, %v388
    %392 = vxpose.xlu0.b32.start [1/16] %v390, 128
    %393 = vxpose.xlu0.b32.cont [2/16] 0.0, 128
    %394 = vxpose.xlu0.b32.cont [3/16] 0.0, 128
    %395 = vxpose.xlu0.b32.cont [4/16] 0.0, 128
    %396 = vxpose.xlu0.b32.cont [5/16] 0.0, 128
    %397 = vxpose.xlu0.b32.cont [6/16] 0.0, 128
    %398 = vxpose.xlu0.b32.cont [7/16] 0.0, 128
    %399 = vxpose.xlu0.b32.cont [8/16] 0.0, 128
    %400 = vxpose.xlu0.b32.cont [9/16] 0.0, 128
    %401 = vxpose.xlu0.b32.cont [10/16] 0.0, 128
    %402 = vxpose.xlu0.b32.cont [11/16] 0.0, 128
    %403 = vxpose.xlu0.b32.cont [12/16] 0.0, 128
    %404 = vxpose.xlu0.b32.cont [13/16] 0.0, 128
    %405 = vxpose.xlu0.b32.cont [14/16] 0.0, 128
    %406 = vxpose.xlu0.b32.cont [15/16] 0.0, 128
    %407 = vxpose.xlu0.b32.end [16/16] 0.0, 128
    %v408 = vpop.trf.xlu0
    %v409 = vpop.trf.xlu0
    %v410 = vpop.trf.xlu0
    %v411 = vpop.trf.xlu0
    %v412 = vpop.trf.xlu0
    %v413 = vpop.trf.xlu0
    %v414 = vpop.trf.xlu0
    %v415 = vpop.trf.xlu0
    %v416 = vpop.trf.xlu0
    %v417 = vpop.trf.xlu0
    %v418 = vpop.trf.xlu0
    %v419 = vpop.trf.xlu0
    %v420 = vpop.trf.xlu0
    %v421 = vpop.trf.xlu0
    %v422 = vpop.trf.xlu0
    %v423 = vpop.trf.xlu0
    %vm424 = vcmask 58368
    %v425 = vsel %vm424, %v408, -inf
    %426 = vmax.xlane.f32.xlu0 %v425
    %v427 = vpop.xlane.xlu0 %426
    %v428 = vsub.f32 %v408, %v427
    %v429 = vmul.f32 %v428, 1.442695
    %v430 = vpow.pop %v429
    %v431 = vsel %vm424, %v430, 0.0
    %432 = vadd.xlane.f32.xlu0 %v431
    %v433 = vpop.xlane.xlu0 %432
    %v434 = vrcp.pop %v433
    %v435 = vmul.f32 %v430, %v434
    %436 = vst.msk [vmem:[#allocation2] sm:$0x3] %vm424, %v435
    // Predicated region
    $region26: #{tpu_custom_call.1} parent=1 // pred_check
      _
    $region27: #{tpu_custom_call.1} parent=1 // pred_check_branch
      %438 = sbr.rel (0) target = $region29
    $region28: #{tpu_custom_call.1} parent=1 // pred_region
      %s440 = ssub.s32 32, 32
      %441 = vsyncadd [#allocation3], %s440
      %s443 = sshll.u32 [#allocation2], 4
      %s444 = int_to_ptr.vmem [resolvable:$true] %s443
      %446 = dma.vmem_to_hbm [thread:$0]  %s444, 32, %s6, [#allocation3]
    $region29: #{tpu_custom_call.1} parent=1 // pred_fallthru
      _
    // Predicated region
    $region30: #{tpu_custom_call.1} parent=1 // pred_check
      _
    $region31: #{tpu_custom_call.1} parent=1 // pred_check_branch
      %448 = sbr.rel (0) target = $region33
    $region32: #{tpu_custom_call.1} parent=1 // pred_region
      %449 = dma.done [#allocation3], 32
    $region33: #{tpu_custom_call.1} parent=1 // pred_fallthru
      _
    %450 = vsyncpa [#allocation3], 1

</llo_original>
